<compile_context>
chip_gen: v5e
topology: v5e:2x2
jax: 0.10.0
libtpu: 0.0.40
codegen_flags: <defaults>
</compile_context>

<pallas_src>
import jax
import jax.numpy as jnp
from jax.experimental import pallas as pl
from jax.experimental.pallas import tpu as pltpu

_LANE = 128


def _final_conv_kernel(w_ref, b_ref, x_ref, o_ref):
    # w_ref: (C_out, C_in)           f32 in SMEM (scalar reads)
    # b_ref: (C_out,)                f32 in SMEM (scalar reads)
    # x_ref: (n_blk, C_in,  S, 128)  f32 in VMEM
    # o_ref: (n_blk, C_out, S, 128)  f32 in VMEM
    c_out, c_in = w_ref.shape
    n_blk = x_ref.shape[0]

    for n in range(n_blk):                      # tiny static unrolls (VPU FMAs)
        for co in range(c_out):
            acc = x_ref[n, 0] * w_ref[co, 0] + b_ref[co]     # (S, 128)
            for ci in range(1, c_in):
                acc = acc + x_ref[n, ci] * w_ref[co, ci]
            # Direct, lane+sublane-dense store of one output channel slab.
            o_ref[n, co] = acc.astype(o_ref.dtype)


def _round_up(v, m):
    return -(-v // m) * m


def final_conv(x_nchw, weight, bias):
    """1x1 conv, stride 1.

    x_nchw: (N, C_in, H, W) float32
    weight: (C_out, C_in)   float32   (the (1,1) kernel dims are squeezed)
    bias:   (C_out,)        float32
    returns (N, C_out, H, W) float32
    """
    N, C_in, H, W = x_nchw.shape
    C_out = weight.shape[0]
    HW = H * W

    R = -(-HW // _LANE)                 # rows of 128 pixels
    HW_pad = R * _LANE

    x3d = x_nchw.reshape(N, C_in, HW)
    if HW_pad != HW:
        # TODO(synk): unaligned H*W costs one extra HBM pass for this pad;
        # typical U-Net spatial sizes (powers of two) never take this path.
        x3d = jnp.pad(x3d, ((0, 0), (0, 0), (0, HW_pad - HW)))
    x4d = x3d.reshape(N, C_in, R, _LANE)        # contiguous => free reshape

    # ---- tile selection ------------------------------------------------------
    # Bytes per row-of-128-pixels, double-buffered input + output, f32.
    bytes_per_row_db = (C_in + C_out) * _LANE * 4 * 2
    cap_rows = max(8, ((14 << 20) // bytes_per_row_db) // 8 * 8)   # ~14 MiB budget

    if R > cap_rows:
        # Large images: tile spatially; >= 2 spatial steps guaranteed.
        n_blk, s_rows = 1, cap_rows
    else:
        # Whole image fits one tile: group several images per step.
        s_rows = R
        n_blk = max(1, min(N, cap_rows // max(R, 1)))
        if N > 1:
            # Keep at least 2 batch-grid steps so v7x's second TC has work.
            n_blk = min(n_blk, max(1, (N + 1) // 2))
        elif R >= 16:
            # N == 1: split spatially into >= 2 blocks instead.
            s_rows = max(8, _round_up(-(-R // 2), 8))

    grid = (pl.cdiv(N, n_blk), pl.cdiv(R, s_rows))

    out4d = pl.pallas_call(
        _final_conv_kernel,
        out_shape=jax.ShapeDtypeStruct((N, C_out, R, _LANE), x4d.dtype),
        grid_spec=pltpu.PrefetchScalarGridSpec(
            num_scalar_prefetch=0,
            grid=grid,
            in_specs=[
                # Weight / bias live in SMEM as scalars (no per-step VMEM DMA).
                pl.BlockSpec(memory_space=pltpu.MemorySpace.SMEM),
                pl.BlockSpec(memory_space=pltpu.MemorySpace.SMEM),
                # Input tile: (n_blk, C_in, s_rows, 128) — last two dims are
                # (multiple of 8 or full-dim, 128) => dense vreg layout.
                pl.BlockSpec((n_blk, C_in, s_rows, _LANE),
                             lambda n, t: (n, 0, t, 0)),
            ],
            # Output tile: (n_blk, C_out, s_rows, 128) — lane- and sublane-dense.
            out_specs=pl.BlockSpec((n_blk, C_out, s_rows, _LANE),
                                   lambda n, t: (n, 0, t, 0)),
        ),
        compiler_params=pltpu.CompilerParams(
            dimension_semantics=("parallel", "parallel"),
            vmem_limit_bytes=32 << 20,
        ),
    )(weight, bias, x4d)

    out3d = out4d.reshape(N, C_out, HW_pad)
    if HW_pad != HW:
        out3d = out3d[:, :, :HW]
    return out3d.reshape(N, C_out, H, W)


if __name__ == "__main__":
    # Small shapes consistent with the module's forward.
    N, C_in, C_out, H, W = 2, 4, 3, 16, 16

    key = jax.random.PRNGKey(0)
    kx, kw, kb = jax.random.split(key, 3)

    x = jax.random.normal(kx, (N, C_in, H, W), dtype=jnp.float32)
    # Deterministic parameter init (mimics nn.Conv2d's small uniform init).
    bound = 1.0 / (C_in ** 0.5)
    weight = jax.random.uniform(kw, (C_out, C_in), minval=-bound, maxval=bound,
                                dtype=jnp.float32)
    bias = jax.random.uniform(kb, (C_out,), minval=-bound, maxval=bound,
                              dtype=jnp.float32)

    out = final_conv(x, weight, bias)
    out = jax.block_until_ready(out)

    # Cross-check against a plain-JAX reference of the same math.
    ref = jnp.einsum("nchw,oc->nohw", x, weight) + bias[None, :, None, None]
    assert out.shape == (N, C_out, H, W)
    assert jnp.allclose(out, ref, atol=1e-5, rtol=1e-5)

    print("KERNEL_OK")
</pallas_src>

<mosaic_0001>
module attributes {stable_mosaic.version = 11 : i64} {
  func.func @_final_conv_kernel(%arg0: i32, %arg1: i32, %arg2: memref<3x4xf32, #tpu.memory_space<smem>>, %arg3: memref<3xf32, #tpu.memory_space<smem>>, %arg4: memref<1x4x2x128xf32, #tpu.memory_space<vmem>>, %arg5: memref<1x3x2x128xf32, #tpu.memory_space<vmem>>) attributes {dimension_semantics = [#tpu.dimension_semantics<parallel>, #tpu.dimension_semantics<parallel>], iteration_bounds = array<i64: 2, 1>, scalar_prefetch = 0 : i64, scratch_operands = 0 : i64, tpu.core_type = #tpu.core_type<tc>, window_params = [{transform_indices = @transform_0, window_bounds = array<i64: 3, 4>}, {transform_indices = @transform_1, window_bounds = array<i64: 3>}, {transform_indices = @transform_2, window_bounds = array<i64: 1, 4, 2, 128>}, {transform_indices = @transform_3, window_bounds = array<i64: 1, 3, 2, 128>}]} {
    %c0 = arith.constant 0 : index
    %c0_0 = arith.constant 0 : index
    %c0_1 = arith.constant 0 : index
    %c0_2 = arith.constant 0 : index
    %0 = vector.load %arg4[%c0, %c0_0, %c0_1, %c0_2] : memref<1x4x2x128xf32, #tpu.memory_space<vmem>>, vector<1x1x2x128xf32>
    %1 = vector.shape_cast %0 : vector<1x1x2x128xf32> to vector<2x128xf32>
    %c0_3 = arith.constant 0 : index
    %c0_4 = arith.constant 0 : index
    %2 = memref.load %arg2[%c0_3, %c0_4] : memref<3x4xf32, #tpu.memory_space<smem>>
    %3 = vector.broadcast %2 : f32 to vector<2x128xf32>
    %4 = arith.mulf %1, %3 : vector<2x128xf32>
    %c0_5 = arith.constant 0 : index
    %5 = memref.load %arg3[%c0_5] : memref<3xf32, #tpu.memory_space<smem>>
    %6 = vector.broadcast %5 : f32 to vector<2x128xf32>
    %7 = arith.addf %4, %6 : vector<2x128xf32>
    %c0_6 = arith.constant 0 : index
    %c1 = arith.constant 1 : index
    %c0_7 = arith.constant 0 : index
    %c0_8 = arith.constant 0 : index
    %8 = vector.load %arg4[%c0_6, %c1, %c0_7, %c0_8] : memref<1x4x2x128xf32, #tpu.memory_space<vmem>>, vector<1x1x2x128xf32>
    %9 = vector.shape_cast %8 : vector<1x1x2x128xf32> to vector<2x128xf32>
    %c0_9 = arith.constant 0 : index
    %c1_10 = arith.constant 1 : index
    %10 = memref.load %arg2[%c0_9, %c1_10] : memref<3x4xf32, #tpu.memory_space<smem>>
    %11 = vector.broadcast %10 : f32 to vector<2x128xf32>
    %12 = arith.mulf %9, %11 : vector<2x128xf32>
    %13 = arith.addf %7, %12 : vector<2x128xf32>
    %c0_11 = arith.constant 0 : index
    %c2 = arith.constant 2 : index
    %c0_12 = arith.constant 0 : index
    %c0_13 = arith.constant 0 : index
    %14 = vector.load %arg4[%c0_11, %c2, %c0_12, %c0_13] : memref<1x4x2x128xf32, #tpu.memory_space<vmem>>, vector<1x1x2x128xf32>
    %15 = vector.shape_cast %14 : vector<1x1x2x128xf32> to vector<2x128xf32>
    %c0_14 = arith.constant 0 : index
    %c2_15 = arith.constant 2 : index
    %16 = memref.load %arg2[%c0_14, %c2_15] : memref<3x4xf32, #tpu.memory_space<smem>>
    %17 = vector.broadcast %16 : f32 to vector<2x128xf32>
    %18 = arith.mulf %15, %17 : vector<2x128xf32>
    %19 = arith.addf %13, %18 : vector<2x128xf32>
    %c0_16 = arith.constant 0 : index
    %c3 = arith.constant 3 : index
    %c0_17 = arith.constant 0 : index
    %c0_18 = arith.constant 0 : index
    %20 = vector.load %arg4[%c0_16, %c3, %c0_17, %c0_18] : memref<1x4x2x128xf32, #tpu.memory_space<vmem>>, vector<1x1x2x128xf32>
    %21 = vector.shape_cast %20 : vector<1x1x2x128xf32> to vector<2x128xf32>
    %c0_19 = arith.constant 0 : index
    %c3_20 = arith.constant 3 : index
    %22 = memref.load %arg2[%c0_19, %c3_20] : memref<3x4xf32, #tpu.memory_space<smem>>
    %23 = vector.broadcast %22 : f32 to vector<2x128xf32>
    %24 = arith.mulf %21, %23 : vector<2x128xf32>
    %25 = arith.addf %19, %24 : vector<2x128xf32>
    %c0_21 = arith.constant 0 : index
    %c0_22 = arith.constant 0 : index
    %c0_23 = arith.constant 0 : index
    %c0_24 = arith.constant 0 : index
    %26 = vector.load %arg5[%c0_21, %c0_22, %c0_23, %c0_24] : memref<1x3x2x128xf32, #tpu.memory_space<vmem>>, vector<1x1x2x128xf32>
    %27 = vector.shape_cast %26 : vector<1x1x2x128xf32> to vector<2x128xf32>
    %28 = vector.shape_cast %25 : vector<2x128xf32> to vector<1x1x2x128xf32>
    tpu.vector_store %arg5[%c0_21, %c0_22, %c0_23, %c0_24], %28 {strides = array<i32>} : memref<1x3x2x128xf32, #tpu.memory_space<vmem>>, vector<1x1x2x128xf32>,
    %c0_25 = arith.constant 0 : index
    %c0_26 = arith.constant 0 : index
    %c0_27 = arith.constant 0 : index
    %c0_28 = arith.constant 0 : index
    %29 = vector.load %arg4[%c0_25, %c0_26, %c0_27, %c0_28] : memref<1x4x2x128xf32, #tpu.memory_space<vmem>>, vector<1x1x2x128xf32>
    %30 = vector.shape_cast %29 : vector<1x1x2x128xf32> to vector<2x128xf32>
    %c1_29 = arith.constant 1 : index
    %c0_30 = arith.constant 0 : index
    %31 = memref.load %arg2[%c1_29, %c0_30] : memref<3x4xf32, #tpu.memory_space<smem>>
    %32 = vector.broadcast %31 : f32 to vector<2x128xf32>
    %33 = arith.mulf %30, %32 : vector<2x128xf32>
    %c1_31 = arith.constant 1 : index
    %34 = memref.load %arg3[%c1_31] : memref<3xf32, #tpu.memory_space<smem>>
    %35 = vector.broadcast %34 : f32 to vector<2x128xf32>
    %36 = arith.addf %33, %35 : vector<2x128xf32>
    %c0_32 = arith.constant 0 : index
    %c1_33 = arith.constant 1 : index
    %c0_34 = arith.constant 0 : index
    %c0_35 = arith.constant 0 : index
    %37 = vector.load %arg4[%c0_32, %c1_33, %c0_34, %c0_35] : memref<1x4x2x128xf32, #tpu.memory_space<vmem>>, vector<1x1x2x128xf32>
    %38 = vector.shape_cast %37 : vector<1x1x2x128xf32> to vector<2x128xf32>
    %c1_36 = arith.constant 1 : index
    %c1_37 = arith.constant 1 : index
    %39 = memref.load %arg2[%c1_36, %c1_37] : memref<3x4xf32, #tpu.memory_space<smem>>
    %40 = vector.broadcast %39 : f32 to vector<2x128xf32>
    %41 = arith.mulf %38, %40 : vector<2x128xf32>
    %42 = arith.addf %36, %41 : vector<2x128xf32>
    %c0_38 = arith.constant 0 : index
    %c2_39 = arith.constant 2 : index
    %c0_40 = arith.constant 0 : index
    %c0_41 = arith.constant 0 : index
    %43 = vector.load %arg4[%c0_38, %c2_39, %c0_40, %c0_41] : memref<1x4x2x128xf32, #tpu.memory_space<vmem>>, vector<1x1x2x128xf32>
    %44 = vector.shape_cast %43 : vector<1x1x2x128xf32> to vector<2x128xf32>
    %c1_42 = arith.constant 1 : index
    %c2_43 = arith.constant 2 : index
    %45 = memref.load %arg2[%c1_42, %c2_43] : memref<3x4xf32, #tpu.memory_space<smem>>
    %46 = vector.broadcast %45 : f32 to vector<2x128xf32>
    %47 = arith.mulf %44, %46 : vector<2x128xf32>
    %48 = arith.addf %42, %47 : vector<2x128xf32>
    %c0_44 = arith.constant 0 : index
    %c3_45 = arith.constant 3 : index
    %c0_46 = arith.constant 0 : index
    %c0_47 = arith.constant 0 : index
    %49 = vector.load %arg4[%c0_44, %c3_45, %c0_46, %c0_47] : memref<1x4x2x128xf32, #tpu.memory_space<vmem>>, vector<1x1x2x128xf32>
    %50 = vector.shape_cast %49 : vector<1x1x2x128xf32> to vector<2x128xf32>
    %c1_48 = arith.constant 1 : index
    %c3_49 = arith.constant 3 : index
    %51 = memref.load %arg2[%c1_48, %c3_49] : memref<3x4xf32, #tpu.memory_space<smem>>
    %52 = vector.broadcast %51 : f32 to vector<2x128xf32>
    %53 = arith.mulf %50, %52 : vector<2x128xf32>
    %54 = arith.addf %48, %53 : vector<2x128xf32>
    %c0_50 = arith.constant 0 : index
    %c1_51 = arith.constant 1 : index
    %c0_52 = arith.constant 0 : index
    %c0_53 = arith.constant 0 : index
    %55 = vector.load %arg5[%c0_50, %c1_51, %c0_52, %c0_53] : memref<1x3x2x128xf32, #tpu.memory_space<vmem>>, vector<1x1x2x128xf32>
    %56 = vector.shape_cast %55 : vector<1x1x2x128xf32> to vector<2x128xf32>
    %57 = vector.shape_cast %54 : vector<2x128xf32> to vector<1x1x2x128xf32>
    tpu.vector_store %arg5[%c0_50, %c1_51, %c0_52, %c0_53], %57 {strides = array<i32>} : memref<1x3x2x128xf32, #tpu.memory_space<vmem>>, vector<1x1x2x128xf32>,
    %c0_54 = arith.constant 0 : index
    %c0_55 = arith.constant 0 : index
    %c0_56 = arith.constant 0 : index
    %c0_57 = arith.constant 0 : index
    %58 = vector.load %arg4[%c0_54, %c0_55, %c0_56, %c0_57] : memref<1x4x2x128xf32, #tpu.memory_space<vmem>>, vector<1x1x2x128xf32>
    %59 = vector.shape_cast %58 : vector<1x1x2x128xf32> to vector<2x128xf32>
    %c2_58 = arith.constant 2 : index
    %c0_59 = arith.constant 0 : index
    %60 = memref.load %arg2[%c2_58, %c0_59] : memref<3x4xf32, #tpu.memory_space<smem>>
    %61 = vector.broadcast %60 : f32 to vector<2x128xf32>
    %62 = arith.mulf %59, %61 : vector<2x128xf32>
    %c2_60 = arith.constant 2 : index
    %63 = memref.load %arg3[%c2_60] : memref<3xf32, #tpu.memory_space<smem>>
    %64 = vector.broadcast %63 : f32 to vector<2x128xf32>
    %65 = arith.addf %62, %64 : vector<2x128xf32>
    %c0_61 = arith.constant 0 : index
    %c1_62 = arith.constant 1 : index
    %c0_63 = arith.constant 0 : index
    %c0_64 = arith.constant 0 : index
    %66 = vector.load %arg4[%c0_61, %c1_62, %c0_63, %c0_64] : memref<1x4x2x128xf32, #tpu.memory_space<vmem>>, vector<1x1x2x128xf32>
    %67 = vector.shape_cast %66 : vector<1x1x2x128xf32> to vector<2x128xf32>
    %c2_65 = arith.constant 2 : index
    %c1_66 = arith.constant 1 : index
    %68 = memref.load %arg2[%c2_65, %c1_66] : memref<3x4xf32, #tpu.memory_space<smem>>
    %69 = vector.broadcast %68 : f32 to vector<2x128xf32>
    %70 = arith.mulf %67, %69 : vector<2x128xf32>
    %71 = arith.addf %65, %70 : vector<2x128xf32>
    %c0_67 = arith.constant 0 : index
    %c2_68 = arith.constant 2 : index
    %c0_69 = arith.constant 0 : index
    %c0_70 = arith.constant 0 : index
    %72 = vector.load %arg4[%c0_67, %c2_68, %c0_69, %c0_70] : memref<1x4x2x128xf32, #tpu.memory_space<vmem>>, vector<1x1x2x128xf32>
    %73 = vector.shape_cast %72 : vector<1x1x2x128xf32> to vector<2x128xf32>
    %c2_71 = arith.constant 2 : index
    %c2_72 = arith.constant 2 : index
    %74 = memref.load %arg2[%c2_71, %c2_72] : memref<3x4xf32, #tpu.memory_space<smem>>
    %75 = vector.broadcast %74 : f32 to vector<2x128xf32>
    %76 = arith.mulf %73, %75 : vector<2x128xf32>
    %77 = arith.addf %71, %76 : vector<2x128xf32>
    %c0_73 = arith.constant 0 : index
    %c3_74 = arith.constant 3 : index
    %c0_75 = arith.constant 0 : index
    %c0_76 = arith.constant 0 : index
    %78 = vector.load %arg4[%c0_73, %c3_74, %c0_75, %c0_76] : memref<1x4x2x128xf32, #tpu.memory_space<vmem>>, vector<1x1x2x128xf32>
    %79 = vector.shape_cast %78 : vector<1x1x2x128xf32> to vector<2x128xf32>
    %c2_77 = arith.constant 2 : index
    %c3_78 = arith.constant 3 : index
    %80 = memref.load %arg2[%c2_77, %c3_78] : memref<3x4xf32, #tpu.memory_space<smem>>
    %81 = vector.broadcast %80 : f32 to vector<2x128xf32>
    %82 = arith.mulf %79, %81 : vector<2x128xf32>
    %83 = arith.addf %77, %82 : vector<2x128xf32>
    %c0_79 = arith.constant 0 : index
    %c2_80 = arith.constant 2 : index
    %c0_81 = arith.constant 0 : index
    %c0_82 = arith.constant 0 : index
    %84 = vector.load %arg5[%c0_79, %c2_80, %c0_81, %c0_82] : memref<1x3x2x128xf32, #tpu.memory_space<vmem>>, vector<1x1x2x128xf32>
    %85 = vector.shape_cast %84 : vector<1x1x2x128xf32> to vector<2x128xf32>
    %86 = vector.shape_cast %83 : vector<2x128xf32> to vector<1x1x2x128xf32>
    tpu.vector_store %arg5[%c0_79, %c2_80, %c0_81, %c0_82], %86 {strides = array<i32>} : memref<1x3x2x128xf32, #tpu.memory_space<vmem>>, vector<1x1x2x128xf32>,
    return
  }
  func.func @transform_0(%arg0: i32, %arg1: i32) -> (i32, i32) {
    %c0_i32 = arith.constant 0 : i32
    %c0_i32_0 = arith.constant 0 : i32
    %c0_i32_1 = arith.constant 0 : i32
    return %c0_i32, %c0_i32_0 : i32, i32
  }
  func.func @transform_1(%arg0: i32, %arg1: i32) -> i32 {
    %c0_i32 = arith.constant 0 : i32
    %c0_i32_0 = arith.constant 0 : i32
    return %c0_i32 : i32
  }
  func.func @transform_2(%arg0: i32, %arg1: i32) -> (i32, i32, i32, i32) {
    %c0_i32 = arith.constant 0 : i32
    %c0_i32_0 = arith.constant 0 : i32
    %c0_i32_1 = arith.constant 0 : i32
    return %arg0, %c0_i32, %arg1, %c0_i32_0 : i32, i32, i32, i32
  }
  func.func @transform_3(%arg0: i32, %arg1: i32) -> (i32, i32, i32, i32) {
    %c0_i32 = arith.constant 0 : i32
    %c0_i32_0 = arith.constant 0 : i32
    %c0_i32_1 = arith.constant 0 : i32
    return %arg0, %c0_i32, %arg1, %c0_i32_0 : i32, i32, i32, i32
  }
}

</mosaic_0001>

<llo_original>
// kernel: tpu_custom_call.1
$region0: #{tpu_custom_call.1}
  #allocation0 [shape = 'u32[]', space=smem, size = 0x4, offset = 0x4, fixed_abs, tag = 'smem constant byte address 0x4 - core index']
  #allocation1 [shape = 'u32[72,128]{1,0:T(1,128)}', space=vmem, size = 0x9000, scoped, tag = 'internal scratch']
  %s0 = inlined_call_operand.hbm [shape: f32[3,4], index: 0, kind: input, shape index: {}]
  %s1 = inlined_call_operand.hbm [shape: f32[3], index: 1, kind: input, shape index: {}]
  %s2 = inlined_call_operand.hbm [shape: f32[2,4,2,128], index: 2, kind: input, shape index: {}]
  %s3 = inlined_call_operand.hbm [shape: f32[2,3,2,128], index: 3, kind: output, shape index: {}]
  %s4 = sld [smem:[#allocation0]]
  $region57: #{tpu_custom_call.1} parent=0
    _
  %s6 = ssub.s32 1, %s4
  %s7 = scalar_select 0, %s6, %s4
  $region1: #{tpu_custom_call.1} parent=0
    #allocation2 [shape = 'u8[2048]{0}', space=smem, size = 0x800, scoped, tag = 'input window, operand 0, single buffered']
    #allocation3 [shape = 's32[2]{0}', space=sflag, size = 0x8, scoped, tag = 'scoped memory for tpu_custom_call.1']
    #allocation4 [shape = 's32[2]{0}', space=sflag, size = 0x8, scoped, tag = 'scoped memory for tpu_custom_call.1']
    #allocation5 [shape = 's32[2]{0}', space=sflag, size = 0x8, scoped, tag = 'scoped memory for tpu_custom_call.1']
    #allocation6 [shape = 'u8[512]{0}', space=smem, size = 0x200, scoped, tag = 'input window, operand 1, single buffered']
    #allocation7 [shape = 's32[1]{0}', space=sflag, size = 0x4, scoped, tag = 'scoped memory for tpu_custom_call.1']
    #allocation8 [shape = 'u8[8192]{0}', space=vmem, size = 0x2000, scoped, tag = 'input window, operand 2']
    #allocation9 [shape = 'u8[6144]{0}', space=vmem, size = 0x1800, scoped, tag = 'output window, operand 0']
    %8 = vsyncpa [#allocation5], 0
    %9 = vsyncpa [#allocation7], 0
    %10 = vsyncpa [#allocation3], 0
    %s11 = scalar_lea.sflag [#allocation3], 1
    %12 = vsyncpa %s11, 0
    %13 = vsyncpa [#allocation4], 0
    %s14 = scalar_lea.sflag [#allocation4], 1
    %15 = vsyncpa %s14, 0
    loop: start=0, step=1, limit=4
    $region2: #{tpu_custom_call.1} parent=1 // loop_pre_header
      _
    $region3: #{tpu_custom_call.1} parent=1 // loop_header
      %s17 = sphi 0, %s21
      %p18 = scmp.ge.s32.totalorder %s17, 4
      %s24 = sphi 0, %s36
      %s25 = sphi 0, %s32
      %s26 = sphi 0, %s24
      %s27 = sphi 0, %s25
      %s28 = sphi 0, %s26
      %s29 = sphi 0, %s27
      %s37 = sphi 0, %s37
      %s39 = sphi 0, %s37
      %s40 = sphi 0, %s39
      %s54 = sphi 0, %s40
      %s58 = sphi 0, %s58
      %s60 = sphi 0, %s58
      %s61 = sphi 0, %s60
      %s75 = sphi 0, %s61
      %s83 = sphi 0, %s85
      %s86 = sphi 0, %s83
      %s87 = sphi 0, %s86
      %s103 = sphi 0, %s87
      %s111 = sphi 0, %s113
      %s114 = sphi 0, %s111
      %s115 = sphi 0, %s114
      %s131 = sphi 0, %s115
    $region4: #{tpu_custom_call.1} parent=1 // loop_header_branch
      %20 = sbr.rel (%p18) target = $region8
    $region5: #{tpu_custom_call.1} parent=1 // loop_body
      %s22 = ssub.s32 %s17, 1
      %s23 = ssub.s32 %s17, 2
      %s30 = sadd.s32 1, %s25
      %p31 = scmp.ge.s32.totalorder %s30, 1
      %s32 = scalar_select %p31, 0, %s30
      %s33 = sadd.s32 1, %s24
      %s34 = scalar_select %p31, %s33, %s24
      %p35 = scmp.ge.s32.totalorder %s34, 2
      %s36 = scalar_select %p35, 0, %s34
      %s38 = sadd.s32 %s37, 1
      %p41 = scmp.eq.s32.totalorder %s17, 1
      %p42 = scmp.ne.s32.totalorder %s37, %s39
      %p43 = scmp.eq.s32.totalorder %s17, 0
      %p44 = por %p42, %p43
      %p45 = scmp.ne.s32.totalorder %s37, %s39
      %p46 = scmp.eq.s32.totalorder %s22, 1
      %p47 = por %p45, %p46
      %p48 = scmp.ne.s32.totalorder %s39, %s40
      %p49 = scmp.eq.s32.totalorder %s22, 0
      %p50 = por %p48, %p49
      %p51 = scmp.ne.s32.totalorder %s39, %s40
      %p52 = scmp.eq.s32.totalorder %s23, 1
      %p53 = por %p51, %p52
      %p55 = scmp.ne.s32.totalorder %s40, %s54
      %p56 = scmp.eq.s32.totalorder %s23, 0
      %p57 = por %p55, %p56
      %s59 = sadd.s32 %s58, 1
      %p62 = scmp.eq.s32.totalorder %s17, 1
      %p63 = scmp.ne.s32.totalorder %s58, %s60
      %p64 = scmp.eq.s32.totalorder %s17, 0
      %p65 = por %p63, %p64
      %p66 = scmp.ne.s32.totalorder %s58, %s60
      %p67 = scmp.eq.s32.totalorder %s22, 1
      %p68 = por %p66, %p67
      %p69 = scmp.ne.s32.totalorder %s60, %s61
      %p70 = scmp.eq.s32.totalorder %s22, 0
      %p71 = por %p69, %p70
      %p72 = scmp.ne.s32.totalorder %s60, %s61
      %p73 = scmp.eq.s32.totalorder %s23, 1
      %p74 = por %p72, %p73
      %p76 = scmp.ne.s32.totalorder %s61, %s75
      %p77 = scmp.eq.s32.totalorder %s23, 0
      %p78 = por %p76, %p77
      %s79 = ssub.s32 %s24, %s36
      %s80 = ssub.s32 %s25, %s32
      %s81 = sor.u32 %s79, %s80
      %p82 = scmp.eq.s32.totalorder %s81, 0
      %s84 = sadd.s32 %s83, 1
      %s85 = scalar_select %p82, %s83, %s84
      %p88 = pneg %p82
      %p89 = scmp.eq.s32.totalorder %s17, 1
      %p90 = por %p88, %p89
      %p91 = scmp.ne.s32.totalorder %s83, %s86
      %p92 = scmp.eq.s32.totalorder %s17, 0
      %p93 = por %p91, %p92
      %p94 = scmp.ne.s32.totalorder %s83, %s86
      %p95 = scmp.eq.s32.totalorder %s22, 1
      %p96 = por %p94, %p95
      %p97 = scmp.ne.s32.totalorder %s86, %s87
      %p98 = scmp.eq.s32.totalorder %s22, 0
      %p99 = por %p97, %p98
      %p100 = scmp.ne.s32.totalorder %s86, %s87
      %p101 = scmp.eq.s32.totalorder %s23, 1
      %p102 = por %p100, %p101
      %p104 = scmp.ne.s32.totalorder %s87, %s103
      %p105 = scmp.eq.s32.totalorder %s23, 0
      %p106 = por %p104, %p105
      %s107 = ssub.s32 %s24, %s36
      %s108 = ssub.s32 %s25, %s32
      %s109 = sor.u32 %s107, %s108
      %p110 = scmp.eq.s32.totalorder %s109, 0
      %s112 = sadd.s32 %s111, 1
      %s113 = scalar_select %p110, %s111, %s112
      %p116 = pneg %p110
      %p117 = scmp.eq.s32.totalorder %s17, 1
      %p118 = por %p116, %p117
      %p119 = scmp.ne.s32.totalorder %s111, %s114
      %p120 = scmp.eq.s32.totalorder %s17, 0
      %p121 = por %p119, %p120
      %p122 = scmp.ne.s32.totalorder %s111, %s114
      %p123 = scmp.eq.s32.totalorder %s22, 1
      %p124 = por %p122, %p123
      %p125 = scmp.ne.s32.totalorder %s114, %s115
      %p126 = scmp.eq.s32.totalorder %s22, 0
      %p127 = por %p125, %p126
      %p128 = scmp.ne.s32.totalorder %s114, %s115
      %p129 = scmp.eq.s32.totalorder %s23, 1
      %p130 = por %p128, %p129
      %p132 = scmp.ne.s32.totalorder %s115, %s131
      %p133 = scmp.eq.s32.totalorder %s23, 0
      %p134 = por %p132, %p133
      %p135 = scmp.le.s32.totalorder 1, %s17
      %p136 = scmp.lt.s32.totalorder %s17, 3
      %p137 = pnand %p135, %p136
      %p138 = pneg %p137
      // Predicated region
      $region9: #{tpu_custom_call.1} parent=5 // pred_check
        _
      $region10: #{tpu_custom_call.1} parent=5 // pred_check_branch
        %140 = sbr.rel (%p137) target = $region12
      $region11: #{tpu_custom_call.1} parent=5 // pred_region
        %s141 = ssub.s32 %s17, 1
        // Predicated region
        $region13: #{tpu_custom_call.1} parent=11 // pred_check
          %p142 = pneg %p50
        $region14: #{tpu_custom_call.1} parent=11 // pred_check_branch
          %144 = sbr.rel (%p142) target = $region16
        $region15: #{tpu_custom_call.1} parent=11 // pred_region
          %146 = vsyncadd [#allocation5], 0
          %s148 = sshll.u32 %s0, 4
          %s149 = int_to_ptr.hbm [resolvable:$true] %s148
          %151 = dma.hbm_to_smem %s149, 64, [#allocation2], [#allocation5]
        $region16: #{tpu_custom_call.1} parent=11 // pred_fallthru
          _
        // Predicated region
        $region17: #{tpu_custom_call.1} parent=11 // pred_check
          %p152 = pneg %p71
        $region18: #{tpu_custom_call.1} parent=11 // pred_check_branch
          %154 = sbr.rel (%p152) target = $region20
        $region19: #{tpu_custom_call.1} parent=11 // pred_region
          %156 = vsyncadd [#allocation7], 0
          %s158 = sshll.u32 %s1, 4
          %s159 = int_to_ptr.hbm [resolvable:$true] %s158
          %161 = dma.hbm_to_smem %s159, 16, [#allocation6], [#allocation7]
        $region20: #{tpu_custom_call.1} parent=11 // pred_fallthru
          _
      $region12: #{tpu_custom_call.1} parent=5 // pred_fallthru
        _
      %p162 = scmp.lt.s32.totalorder %s17, 2
      // Predicated region
      $region21: #{tpu_custom_call.1} parent=5 // pred_check
        %p163 = pneg %p162
      $region22: #{tpu_custom_call.1} parent=5 // pred_check_branch
        %165 = sbr.rel (%p163) target = $region24
      $region23: #{tpu_custom_call.1} parent=5 // pred_region
        // Predicated region
        $region25: #{tpu_custom_call.1} parent=23 // pred_check
          %p166 = pneg %p93
        $region26: #{tpu_custom_call.1} parent=23 // pred_check_branch
          %168 = sbr.rel (%p166) target = $region28
        $region27: #{tpu_custom_call.1} parent=23 // pred_region
          %s169 = sand.u32 %s83, 1
          %s170 = scalar_lea.sflag [#allocation3], %s169
          %s171 = sand.u32 %s83, 1
          %s172 = smul.addr %s171, 8
          %s173 = scalar_lea.vmem [#allocation8], %s172
          %175 = vsyncadd %s170, 0
          %s176 = smul.addr %s24, 4
          %s177 = sadd.s32 %s25, %s176
          %s178 = smul.addr %s177, 2
          %s179 = scalar_lea.hbm %s2, %s178
          %s180 = sshll.u32 %s179, 4
          %s181 = int_to_ptr.hbm [resolvable:$true] %s180
          %s182 = sshll.u32 %s173, 4
          %s183 = int_to_ptr.vmem [resolvable:$true] %s182
          %188 = dma.hbm_to_vmem [thread:$0]  %s181, 128, %s183, %s170, 32, 32, 2
        $region28: #{tpu_custom_call.1} parent=23 // pred_fallthru
          _
      $region24: #{tpu_custom_call.1} parent=5 // pred_fallthru
        _
      %p189 = scmp.le.s32.totalorder 1, %s17
      %p190 = scmp.lt.s32.totalorder %s17, 3
      %p191 = pnand %p189, %p190
      %p192 = pneg %p191
      // Predicated region
      $region29: #{tpu_custom_call.1} parent=5 // pred_check
        _
      $region30: #{tpu_custom_call.1} parent=5 // pred_check_branch
        %194 = sbr.rel (%p191) target = $region32
      $region31: #{tpu_custom_call.1} parent=5 // pred_region
        %s195 = ssub.s32 %s17, 1
        // Predicated region
        $region33: #{tpu_custom_call.1} parent=31 // pred_check
          %p196 = pneg %p50
        $region34: #{tpu_custom_call.1} parent=31 // pred_check_branch
          %198 = sbr.rel (%p196) target = $region36
        $region35: #{tpu_custom_call.1} parent=31 // pred_region
          %200 = dma.done [#allocation5], 64
        $region36: #{tpu_custom_call.1} parent=31 // pred_fallthru
          _
        // Predicated region
        $region37: #{tpu_custom_call.1} parent=31 // pred_check
          %p201 = pneg %p71
        $region38: #{tpu_custom_call.1} parent=31 // pred_check_branch
          %203 = sbr.rel (%p201) target = $region40
        $region39: #{tpu_custom_call.1} parent=31 // pred_region
          %205 = dma.done [#allocation7], 16
        $region40: #{tpu_custom_call.1} parent=31 // pred_fallthru
          _
        %s206 = sand.u32 %s86, 1
        %s207 = scalar_lea.sflag [#allocation3], %s206
        %s208 = sand.u32 %s86, 1
        %s209 = smul.addr %s208, 8
        %s210 = scalar_lea.vmem [#allocation8], %s209
        // Predicated region
        $region41: #{tpu_custom_call.1} parent=31 // pred_check
          %p211 = pneg %p99
        $region42: #{tpu_custom_call.1} parent=31 // pred_check_branch
          %213 = sbr.rel (%p211) target = $region44
        $region43: #{tpu_custom_call.1} parent=31 // pred_region
          %215 = dma.done %s207, 128
        $region44: #{tpu_custom_call.1} parent=31 // pred_fallthru
          _
        %216 = sfence
        %p217 = pneg %p50
        %p218 = pneg %p47
        %p219 = pneg %p71
        %p220 = pneg %p68
        %s221 = sand.u32 %s86, 1
        %s222 = scalar_lea.sflag [#allocation3], %s221
        %s223 = sand.u32 %s86, 1
        %s224 = smul.addr %s223, 8
        %s225 = scalar_lea.vmem [#allocation8], %s224
        %p226 = pneg %p99
        %p227 = pneg %p96
        %p228 = pneg %p127
        %p229 = pneg %p124
        %s230 = sand.u32 %s114, 1
        %s231 = scalar_lea.sflag [#allocation4], %s230
        %s232 = sand.u32 %s114, 1
        %s233 = smul.addr %s232, 6
        %s234 = scalar_lea.vmem [#allocation9], %s233
        %v235 = vld [vmem:[%s210] sm:$0x3]
        %s236 = sld [smem:[#allocation2]]
        %v237 = vstv %s236
        %v238 = vmul.f32 %v235, %v237
        %s239 = sld [smem:[#allocation6]]
        %v240 = vstv %s239
        %v241 = vadd.f32 %v238, %v240
        %s242 = scalar_lea.vmem %s210, 2 [#allocation8]
        %v243 = vld [vmem:[%s242] sm:$0x3]
        %s244 = sld [smem:[#allocation2 + $0x1]]
        %v245 = vstv %s244
        %v246 = vmul.f32 %v243, %v245
        %v247 = vadd.f32 %v241, %v246
        %s248 = scalar_lea.vmem %s210, 4 [#allocation8]
        %v249 = vld [vmem:[%s248] sm:$0x3]
        %s250 = sld [smem:[#allocation2 + $0x2]]
        %v251 = vstv %s250
        %v252 = vmul.f32 %v249, %v251
        %v253 = vadd.f32 %v247, %v252
        %s254 = scalar_lea.vmem %s210, 6 [#allocation8]
        %v255 = vld [vmem:[%s254] sm:$0x3]
        %s256 = sld [smem:[#allocation2 + $0x3]]
        %v257 = vstv %s256
        %v258 = vmul.f32 %v255, %v257
        %v259 = vadd.f32 %v253, %v258
        %260 = vst [vmem:[%s234] sm:$0x3] %v259
        %v261 = vld [vmem:[%s210] sm:$0x3]
        %s262 = sld [smem:[#allocation2 + $0x80]]
        %v263 = vstv %s262
        %v264 = vmul.f32 %v261, %v263
        %s265 = sld [smem:[#allocation6 + $0x1]]
        %v266 = vstv %s265
        %v267 = vadd.f32 %v264, %v266
        %v268 = vld [vmem:[%s242] sm:$0x3]
        %s269 = sld [smem:[#allocation2 + $0x81]]
        %v270 = vstv %s269
        %v271 = vmul.f32 %v268, %v270
        %v272 = vadd.f32 %v267, %v271
        %v273 = vld [vmem:[%s248] sm:$0x3]
        %s274 = sld [smem:[#allocation2 + $0x82]]
        %v275 = vstv %s274
        %v276 = vmul.f32 %v273, %v275
        %v277 = vadd.f32 %v272, %v276
        %v278 = vld [vmem:[%s254] sm:$0x3]
        %s279 = sld [smem:[#allocation2 + $0x83]]
        %v280 = vstv %s279
        %v281 = vmul.f32 %v278, %v280
        %v282 = vadd.f32 %v277, %v281
        %s283 = scalar_lea.vmem %s234, 2 [#allocation9]
        %284 = vst [vmem:[%s283] sm:$0x3] %v282
        %v285 = vld [vmem:[%s210] sm:$0x3]
        %s286 = sld [smem:[#allocation2 + $0x100]]
        %v287 = vstv %s286
        %v288 = vmul.f32 %v285, %v287
        %s289 = sld [smem:[#allocation6 + $0x2]]
        %v290 = vstv %s289
        %v291 = vadd.f32 %v288, %v290
        %v292 = vld [vmem:[%s242] sm:$0x3]
        %s293 = sld [smem:[#allocation2 + $0x101]]
        %v294 = vstv %s293
        %v295 = vmul.f32 %v292, %v294
        %v296 = vadd.f32 %v291, %v295
        %v297 = vld [vmem:[%s248] sm:$0x3]
        %s298 = sld [smem:[#allocation2 + $0x102]]
        %v299 = vstv %s298
        %v300 = vmul.f32 %v297, %v299
        %v301 = vadd.f32 %v296, %v300
        %v302 = vld [vmem:[%s254] sm:$0x3]
        %s303 = sld [smem:[#allocation2 + $0x103]]
        %v304 = vstv %s303
        %v305 = vmul.f32 %v302, %v304
        %v306 = vadd.f32 %v301, %v305
        %s307 = scalar_lea.vmem %s234, 4 [#allocation9]
        %308 = vst [vmem:[%s307] sm:$0x3] %v306
        %s309 = sand.u32 %s114, 1
        %s310 = scalar_lea.sflag [#allocation4], %s309
        %s311 = sand.u32 %s114, 1
        %s312 = smul.addr %s311, 6
        %s313 = scalar_lea.vmem [#allocation9], %s312
        // Predicated region
        $region45: #{tpu_custom_call.1} parent=31 // pred_check
          %p314 = pneg %p124
        $region46: #{tpu_custom_call.1} parent=31 // pred_check_branch
          %316 = sbr.rel (%p314) target = $region48
        $region47: #{tpu_custom_call.1} parent=31 // pred_region
          %318 = vsyncadd %s310, 0
          %s319 = smul.addr %s26, 3
          %s320 = sadd.s32 %s27, %s319
          %s321 = smul.addr %s320, 2
          %s322 = scalar_lea.hbm %s3, %s321
          %s323 = sshll.u32 %s313, 4
          %s324 = int_to_ptr.vmem [resolvable:$true] %s323
          %s325 = sshll.u32 %s322, 4
          %s326 = int_to_ptr.hbm [resolvable:$true] %s325
          %331 = dma.vmem_to_hbm [thread:$0]  %s324, 96, %s326, %s310, 32, 32, 2
        $region48: #{tpu_custom_call.1} parent=31 // pred_fallthru
          _
      $region32: #{tpu_custom_call.1} parent=5 // pred_fallthru
        _
      %p332 = scmp.le.s32.totalorder 2, %s17
      // Predicated region
      $region49: #{tpu_custom_call.1} parent=5 // pred_check
        %p333 = pneg %p332
      $region50: #{tpu_custom_call.1} parent=5 // pred_check_branch
        %335 = sbr.rel (%p333) target = $region52
      $region51: #{tpu_custom_call.1} parent=5 // pred_region
        %s336 = ssub.s32 %s17, 2
        // Predicated region
        $region53: #{tpu_custom_call.1} parent=51 // pred_check
          %p337 = pneg %p130
        $region54: #{tpu_custom_call.1} parent=51 // pred_check_branch
          %339 = sbr.rel (%p337) target = $region56
        $region55: #{tpu_custom_call.1} parent=51 // pred_region
          %s340 = sand.u32 %s115, 1
          %s341 = scalar_lea.sflag [#allocation4], %s340
          %s342 = sand.u32 %s115, 1
          %s343 = smul.addr %s342, 6
          %s344 = scalar_lea.vmem [#allocation9], %s343
          %346 = dma.done %s341, 96
        $region56: #{tpu_custom_call.1} parent=51 // pred_fallthru
          _
      $region52: #{tpu_custom_call.1} parent=5 // pred_fallthru
        _
    $region6: #{tpu_custom_call.1} parent=1 // loop_footer
      %s21 = sadd.s32 1, %s17
    $region7: #{tpu_custom_call.1} parent=1 // loop_footer_branch
      %16 = sbr.rel target = $region3
    $region8: #{tpu_custom_call.1} parent=1 // loop_exit
      _
    %347 = vsyncpa [#allocation3], 1
    %s348 = scalar_lea.sflag [#allocation3], 1
    %349 = vsyncpa %s348, 1
    %350 = vsyncpa [#allocation4], 1
    %s351 = scalar_lea.sflag [#allocation4], 1
    %352 = vsyncpa %s351, 1
    %353 = vsyncpa [#allocation5], 1
    %s354 = scalar_lea.sflag [#allocation5], 1
    %355 = vsyncpa %s354, 1
    %356 = vsyncpa [#allocation7], 1

</llo_original>
